<compile_context>
chip_gen: v5e
topology: v5e:2x2
jax: 0.10.0
libtpu: 0.0.40
codegen_flags: <defaults>
</compile_context>

<pallas_src>
import functools
import math

import jax
import jax.numpy as jnp
from jax.experimental import pallas as pl
from jax.experimental.pallas import tpu as pltpu

_HALF_LOG_2PI = 0.5 * math.log(2.0 * math.pi)


def _sac_actor_kernel(idx_ref, eps_ref,
                      w1_ref, b1_ref, w2_ref, b2_ref, wh_ref, bh_ref,
                      out_ref, *, jointlimit):
    B, two_a = out_ref.shape
    A = two_a // 2

    # ---- one_hot(target_quadrant, 4) built from SMEM scalars.
    # (C_Embed is the frozen identity eye(cdim)[:4]; embedding + fc1 collapse
    #  to one_hot(idx, 4) @ W1[:4].)
    col = jax.lax.broadcasted_iota(jnp.int32, (B, 4), 1)
    row = jax.lax.broadcasted_iota(jnp.int32, (B, 4), 0)
    idx_mat = jnp.zeros((B, 4), jnp.int32)
    for i in range(B):  # B is small and static; unrolled scalar-broadcast selects.
        idx_mat = jnp.where(row == i, idx_ref[i], idx_mat)
    onehot = (col == idx_mat).astype(jnp.float32)                    # (B, 4)

    # ---- MLP trunk: relu(fc1) -> relu(fc2)
    h1 = jnp.maximum(
        jnp.dot(onehot, w1_ref[...], preferred_element_type=jnp.float32)
        + b1_ref[...], 0.0)                                          # (B, 256)
    h2 = jnp.maximum(
        jnp.dot(h1.astype(jnp.bfloat16), w2_ref[...],
                preferred_element_type=jnp.float32)
        + b2_ref[...], 0.0)                                          # (B, 256)

    # ---- fused heads: [fc_mean | fc_std] in one matmul, then slice.
    heads = jnp.dot(h2, wh_ref[...],
                    preferred_element_type=jnp.float32) + bh_ref[...]  # (B, 2A)
    loc = heads[:, :A]
    scale = jax.nn.softplus(heads[:, A:])                            # F.softplus

    # ---- reparameterized sample: anchor = loc + scale * eps, eps ~ N(0,1).
    eps = eps_ref[...]                                               # (B, A)
    anchor = loc + scale * eps
    # Normal.log_prob(anchor); (anchor - loc) / scale == eps exactly.
    log_prob = -0.5 * jnp.square(eps) - jnp.log(scale) - _HALF_LOG_2PI

    # tanh squashing + log-det correction (exactly as in the PyTorch forward).
    t = jnp.tanh(anchor)
    out_ref[:, :A] = (t * jointlimit).astype(out_ref.dtype)
    out_ref[:, A:] = (log_prob - jnp.log(1.0 - t * t + 1e-7)).astype(out_ref.dtype)


def sac_actor_forward(target_quadrant, params, rng_key, jointlimit):
    """target_quadrant: (B,) integer in [0, 4).  Returns (real_anchor, real_log_prob)."""
    B = target_quadrant.shape[0]
    A = params["w_heads"].shape[1] // 2

    idx = target_quadrant.astype(jnp.int32).reshape(B)
    # rsample() noise: generated host-side (cheap, (B, A)) and DMA'd in.
    eps = jax.random.normal(rng_key, (B, A), dtype=jnp.float32)

    kernel = functools.partial(_sac_actor_kernel, jointlimit=jointlimit)
    smem = pl.BlockSpec(memory_space=pltpu.MemorySpace.SMEM)
    vmem = pl.BlockSpec(memory_space=pltpu.MemorySpace.VMEM)

    packed = pl.pallas_call(
        kernel,
        out_shape=jax.ShapeDtypeStruct((B, 2 * A), jnp.float32),
        in_specs=[smem, vmem, vmem, vmem, vmem, vmem, vmem, vmem],
        out_specs=vmem,
    )(idx, eps,
      params["w1_top"], params["b1"],
      params["w2"], params["b2"],
      params["w_heads"], params["b_heads"])

    # Free XLA slices on the packed (B, 2A) buffer.
    return packed[:, :A], packed[:, A:]


def init_params(key, cdim, anchor_dim):
    """Synthetic init mimicking nn.Linear default (uniform +/- 1/sqrt(fan_in)).

    The frozen identity embedding is folded into the params: only W1[:4] is kept
    (quadrant indices live in [0, 4)), the two heads are concatenated, and W2 is
    stored in bfloat16 (MXU-native, halves the dominant HBM traffic).
    """
    ks = jax.random.split(key, 8)

    def lin(kw, kb, fan_in, fan_out):
        bound = 1.0 / jnp.sqrt(fan_in)
        w = jax.random.uniform(kw, (fan_in, fan_out), jnp.float32, -bound, bound)
        b = jax.random.uniform(kb, (1, fan_out), jnp.float32, -bound, bound)
        return w, b

    w1, b1 = lin(ks[0], ks[1], cdim, 256)
    w2, b2 = lin(ks[2], ks[3], 256, 256)
    wm, bm = lin(ks[4], ks[5], 256, anchor_dim)
    ws, bs = lin(ks[6], ks[7], 256, anchor_dim)

    return dict(
        w1_top=w1[:4],                                   # (4, 256): eye(cdim)[:4] folded in
        b1=b1,
        w2=w2.astype(jnp.bfloat16),                      # bf16 weight, f32 accumulate
        b2=b2,
        w_heads=jnp.concatenate([wm, ws], axis=1),       # (256, 2A)
        b_heads=jnp.concatenate([bm, bs], axis=1),       # (1, 2A)
    )


if __name__ == "__main__":
    B, CDIM, ANCHOR_DIM = 4, 4, 8
    JOINTLIMIT = 1.5708

    key = jax.random.PRNGKey(0)
    pkey, skey = jax.random.split(key)
    params = init_params(pkey, CDIM, ANCHOR_DIM)
    target_quadrant = jnp.array([0, 1, 2, 3], dtype=jnp.int32)

    real_anchor, real_log_prob = sac_actor_forward(
        target_quadrant, params, rng_key=skey, jointlimit=JOINTLIMIT)
    jax.block_until_ready((real_anchor, real_log_prob))

    assert real_anchor.shape == (B, ANCHOR_DIM)
    assert real_log_prob.shape == (B, ANCHOR_DIM)
    assert bool(jnp.all(jnp.isfinite(real_anchor)))
    assert bool(jnp.all(jnp.isfinite(real_log_prob)))
    assert bool(jnp.all(jnp.abs(real_anchor) <= JOINTLIMIT + 1e-4))
    print("KERNEL_OK")
</pallas_src>

<mosaic_0001>
module attributes {stable_mosaic.version = 11 : i64} {
  func.func @_sac_actor_kernel(%arg0: memref<4xi32, #tpu.memory_space<smem>>, %arg1: memref<4x8xf32, #tpu.memory_space<vmem>>, %arg2: memref<4x256xf32, #tpu.memory_space<vmem>>, %arg3: memref<1x256xf32, #tpu.memory_space<vmem>>, %arg4: memref<256x256xbf16, #tpu.memory_space<vmem>>, %arg5: memref<1x256xf32, #tpu.memory_space<vmem>>, %arg6: memref<256x16xf32, #tpu.memory_space<vmem>>, %arg7: memref<1x16xf32, #tpu.memory_space<vmem>>, %arg8: memref<4x16xf32, #tpu.memory_space<vmem>>) attributes {dimension_semantics = [], scalar_prefetch = 0 : i64, scratch_operands = 0 : i64, tpu.core_type = #tpu.core_type<tc>} {
    %0 = tpu.iota {dimensions = array<i32: 1>} : vector<4x4xi32>
    %1 = tpu.iota {dimensions = array<i32: 0>} : vector<4x4xi32>
    %c0_i32 = arith.constant 0 : i32
    %2 = vector.broadcast %c0_i32 : i32 to vector<4x4xi32>
    %c0_i32_0 = arith.constant 0 : i32
    %3 = vector.broadcast %c0_i32_0 : i32 to vector<4x4xi32>
    %4 = arith.cmpi eq, %1, %3 : vector<4x4xi32>
    %c0 = arith.constant 0 : index
    %5 = memref.load %arg0[%c0] : memref<4xi32, #tpu.memory_space<smem>>
    %6 = vector.broadcast %5 : i32 to vector<4x4xi32>
    %7 = arith.select %4, %6, %2 : vector<4x4xi1>, vector<4x4xi32>
    %c1_i32 = arith.constant 1 : i32
    %8 = vector.broadcast %c1_i32 : i32 to vector<4x4xi32>
    %9 = arith.cmpi eq, %1, %8 : vector<4x4xi32>
    %c1 = arith.constant 1 : index
    %10 = memref.load %arg0[%c1] : memref<4xi32, #tpu.memory_space<smem>>
    %11 = vector.broadcast %10 : i32 to vector<4x4xi32>
    %12 = arith.select %9, %11, %7 : vector<4x4xi1>, vector<4x4xi32>
    %c2_i32 = arith.constant 2 : i32
    %13 = vector.broadcast %c2_i32 : i32 to vector<4x4xi32>
    %14 = arith.cmpi eq, %1, %13 : vector<4x4xi32>
    %c2 = arith.constant 2 : index
    %15 = memref.load %arg0[%c2] : memref<4xi32, #tpu.memory_space<smem>>
    %16 = vector.broadcast %15 : i32 to vector<4x4xi32>
    %17 = arith.select %14, %16, %12 : vector<4x4xi1>, vector<4x4xi32>
    %c3_i32 = arith.constant 3 : i32
    %18 = vector.broadcast %c3_i32 : i32 to vector<4x4xi32>
    %19 = arith.cmpi eq, %1, %18 : vector<4x4xi32>
    %c3 = arith.constant 3 : index
    %20 = memref.load %arg0[%c3] : memref<4xi32, #tpu.memory_space<smem>>
    %21 = vector.broadcast %20 : i32 to vector<4x4xi32>
    %22 = arith.select %19, %21, %17 : vector<4x4xi1>, vector<4x4xi32>
    %23 = arith.cmpi eq, %0, %22 : vector<4x4xi32>
    %24 = arith.extui %23 : vector<4x4xi1> to vector<4x4xi32>
    %25 = arith.sitofp %24 : vector<4x4xi32> to vector<4x4xf32>
    %c0_1 = arith.constant 0 : index
    %c0_2 = arith.constant 0 : index
    %26 = vector.load %arg2[%c0_1, %c0_2] : memref<4x256xf32, #tpu.memory_space<vmem>>, vector<4x256xf32>
    %cst = arith.constant dense<0.000000e+00> : vector<4x256xf32>
    %27 = tpu.matmul %25, %26, %cst {dimension_numbers = #tpu.dot_dimension_numbers<[1], [0], [0], [1], [0, 0, 1, 1], [], []>} : vector<4x4xf32>, vector<4x256xf32>, vector<4x256xf32> -> vector<4x256xf32>
    %c0_3 = arith.constant 0 : index
    %c0_4 = arith.constant 0 : index
    %28 = vector.load %arg3[%c0_3, %c0_4] : memref<1x256xf32, #tpu.memory_space<vmem>>, vector<1x256xf32>
    %29 = vector.broadcast %28 : vector<1x256xf32> to vector<4x256xf32>
    %30 = arith.addf %27, %29 : vector<4x256xf32>
    %cst_5 = arith.constant 0.000000e+00 : f32
    %31 = vector.broadcast %cst_5 : f32 to vector<4x256xf32>
    %32 = arith.maximumf %30, %31 : vector<4x256xf32>
    %33 = arith.truncf %32 : vector<4x256xf32> to vector<4x256xbf16>
    %c0_6 = arith.constant 0 : index
    %c0_7 = arith.constant 0 : index
    %34 = vector.load %arg4[%c0_6, %c0_7] : memref<256x256xbf16, #tpu.memory_space<vmem>>, vector<256x256xbf16>
    %cst_8 = arith.constant dense<0.000000e+00> : vector<4x256xf32>
    %35 = tpu.matmul %33, %34, %cst_8 {dimension_numbers = #tpu.dot_dimension_numbers<[1], [0], [0], [1], [0, 0, 1, 1], [], []>} : vector<4x256xbf16>, vector<256x256xbf16>, vector<4x256xf32> -> vector<4x256xf32>
    %c0_9 = arith.constant 0 : index
    %c0_10 = arith.constant 0 : index
    %36 = vector.load %arg5[%c0_9, %c0_10] : memref<1x256xf32, #tpu.memory_space<vmem>>, vector<1x256xf32>
    %37 = vector.broadcast %36 : vector<1x256xf32> to vector<4x256xf32>
    %38 = arith.addf %35, %37 : vector<4x256xf32>
    %cst_11 = arith.constant 0.000000e+00 : f32
    %39 = vector.broadcast %cst_11 : f32 to vector<4x256xf32>
    %40 = arith.maximumf %38, %39 : vector<4x256xf32>
    %c0_12 = arith.constant 0 : index
    %c0_13 = arith.constant 0 : index
    %41 = vector.load %arg6[%c0_12, %c0_13] : memref<256x16xf32, #tpu.memory_space<vmem>>, vector<256x16xf32>
    %cst_14 = arith.constant dense<0.000000e+00> : vector<4x16xf32>
    %42 = tpu.matmul %40, %41, %cst_14 {dimension_numbers = #tpu.dot_dimension_numbers<[1], [0], [0], [1], [0, 0, 1, 1], [], []>} : vector<4x256xf32>, vector<256x16xf32>, vector<4x16xf32> -> vector<4x16xf32>
    %c0_15 = arith.constant 0 : index
    %c0_16 = arith.constant 0 : index
    %43 = vector.load %arg7[%c0_15, %c0_16] : memref<1x16xf32, #tpu.memory_space<vmem>>, vector<1x16xf32>
    %44 = vector.broadcast %43 : vector<1x16xf32> to vector<4x16xf32>
    %45 = arith.addf %42, %44 : vector<4x16xf32>
    %46 = vector.extract_strided_slice %45 {offsets = [0, 0], sizes = [4, 8], strides = [1, 1]} : vector<4x16xf32> to vector<4x8xf32>
    %47 = vector.extract_strided_slice %45 {offsets = [0, 8], sizes = [4, 8], strides = [1, 1]} : vector<4x16xf32> to vector<4x8xf32>
    %cst_17 = arith.constant 0.000000e+00 : f32
    %48 = vector.broadcast %cst_17 : f32 to vector<4x8xf32>
    %49 = arith.maximumf %47, %48 : vector<4x8xf32>
    %50 = vector.broadcast %cst_17 : f32 to vector<4x8xf32>
    %51 = arith.subf %47, %50 : vector<4x8xf32>
    %52 = arith.cmpf one, %51, %51 : vector<4x8xf32>
    %53 = vector.broadcast %cst_17 : f32 to vector<4x8xf32>
    %54 = arith.addf %47, %53 : vector<4x8xf32>
    %55 = math.absf %51 : vector<4x8xf32>
    %cst_18 = arith.constant 0.000000e+00 : f32
    %56 = vector.broadcast %cst_18 : f32 to vector<4x8xf32>
    %57 = arith.subf %56, %55 : vector<4x8xf32>
    %58 = math.exp %57 : vector<4x8xf32>
    %59 = math.log1p %58 : vector<4x8xf32>
    %60 = arith.addf %49, %59 : vector<4x8xf32>
    %61 = arith.select %52, %54, %60 : vector<4x8xi1>, vector<4x8xf32>
    %c0_19 = arith.constant 0 : index
    %c0_20 = arith.constant 0 : index
    %62 = vector.load %arg1[%c0_19, %c0_20] : memref<4x8xf32, #tpu.memory_space<vmem>>, vector<4x8xf32>
    %63 = arith.mulf %61, %62 : vector<4x8xf32>
    %64 = arith.addf %46, %63 : vector<4x8xf32>
    %65 = arith.mulf %62, %62 : vector<4x8xf32>
    %cst_21 = arith.constant -5.000000e-01 : f32
    %66 = vector.broadcast %cst_21 : f32 to vector<4x8xf32>
    %67 = arith.mulf %66, %65 : vector<4x8xf32>
    %68 = math.log %61 : vector<4x8xf32>
    %69 = arith.subf %67, %68 : vector<4x8xf32>
    %cst_22 = arith.constant 0.918938517 : f32
    %70 = vector.broadcast %cst_22 : f32 to vector<4x8xf32>
    %71 = arith.subf %69, %70 : vector<4x8xf32>
    %72 = math.tanh %64 : vector<4x8xf32>
    %cst_23 = arith.constant 1.570800e+00 : f32
    %73 = vector.broadcast %cst_23 : f32 to vector<4x8xf32>
    %74 = arith.mulf %72, %73 : vector<4x8xf32>
    %c0_24 = arith.constant 0 : index
    %c0_25 = arith.constant 0 : index
    %75 = vector.load %arg8[%c0_24, %c0_25] : memref<4x16xf32, #tpu.memory_space<vmem>>, vector<4x8xf32>
    tpu.vector_store %arg8[%c0_24, %c0_25], %74 {strides = array<i32>} : memref<4x16xf32, #tpu.memory_space<vmem>>, vector<4x8xf32>,
    %76 = arith.mulf %72, %72 : vector<4x8xf32>
    %cst_26 = arith.constant 1.000000e+00 : f32
    %77 = vector.broadcast %cst_26 : f32 to vector<4x8xf32>
    %78 = arith.subf %77, %76 : vector<4x8xf32>
    %cst_27 = arith.constant 1.000000e-07 : f32
    %79 = vector.broadcast %cst_27 : f32 to vector<4x8xf32>
    %80 = arith.addf %78, %79 : vector<4x8xf32>
    %81 = math.log %80 : vector<4x8xf32>
    %82 = arith.subf %71, %81 : vector<4x8xf32>
    %c0_28 = arith.constant 0 : index
    %c8 = arith.constant 8 : index
    %83 = vector.load %arg8[%c0_28, %c8] : memref<4x16xf32, #tpu.memory_space<vmem>>, vector<4x8xf32>
    tpu.vector_store %arg8[%c0_28, %c8], %82 {strides = array<i32>} : memref<4x16xf32, #tpu.memory_space<vmem>>, vector<4x8xf32>,
    return
  }
}

</mosaic_0001>

<llo_original>
// kernel: tpu_custom_call.1
$region0: #{tpu_custom_call.1}
  #allocation0 [shape = 'u32[]', space=smem, size = 0x4, offset = 0x4, fixed_abs, tag = 'smem constant byte address 0x4 - core index']
  #allocation1 [shape = 'u32[72,128]{1,0:T(1,128)}', space=vmem, size = 0x9000, scoped, tag = 'internal scratch']
  %s0 = inlined_call_operand.vmem [shape: s32[4], index: 0, kind: input, shape index: {}]
  %s1 = inlined_call_operand.vmem [shape: f32[4,8], index: 1, kind: input, shape index: {}]
  %s2 = inlined_call_operand.vmem [shape: f32[4,256], index: 2, kind: input, shape index: {}]
  %s3 = inlined_call_operand.vmem [shape: f32[1,256], index: 3, kind: input, shape index: {}]
  %s4 = inlined_call_operand.vmem [shape: bf16[256,256], index: 4, kind: input, shape index: {}]
  %s5 = inlined_call_operand.vmem [shape: f32[1,256], index: 5, kind: input, shape index: {}]
  %s6 = inlined_call_operand.vmem [shape: f32[256,16], index: 6, kind: input, shape index: {}]
  %s7 = inlined_call_operand.vmem [shape: f32[1,16], index: 7, kind: input, shape index: {}]
  %s8 = inlined_call_operand.hbm [shape: f32[4,16], index: 8, kind: output, shape index: {}]
  %s9 = sld [smem:[#allocation0]]
  $region46: #{tpu_custom_call.1} parent=0
    _
  %s11 = ssub.s32 1, %s9
  %s12 = scalar_select 0, %s11, %s9
  $region1: #{tpu_custom_call.1} parent=0
    #allocation2 [shape = 'u8[512]{0}', space=smem, size = 0x200, scoped, tag = 'input window, operand 0, single buffered']
    #allocation3 [shape = 's32[1]{0}', space=sflag, size = 0x4, scoped, tag = 'scoped memory for tpu_custom_call.1']
    #allocation4 [shape = 's32[1]{0}', space=sflag, size = 0x4, scoped, tag = 'scoped memory for tpu_custom_call.1']
    #allocation5 [shape = 'u8[2048]{0}', space=vmem, size = 0x800, scoped, tag = 'output window, operand 0, single buffered']
    %13 = vsyncpa [#allocation4], 0
    %14 = vsyncpa [#allocation3], 0
    // Predicated region
    $region2: #{tpu_custom_call.1} parent=1 // pred_check
      _
    $region3: #{tpu_custom_call.1} parent=1 // pred_check_branch
      %16 = sbr.rel (0) target = $region5
    $region4: #{tpu_custom_call.1} parent=1 // pred_region
      %18 = vsyncadd [#allocation4], 0
      %s20 = sshll.u32 %s0, 4
      %s21 = int_to_ptr.vmem [resolvable:$true] %s20
      %23 = dma.vmem_to_smem %s21, 16, [#allocation2], [#allocation4]
    $region5: #{tpu_custom_call.1} parent=1 // pred_fallthru
      _
    // Predicated region
    $region6: #{tpu_custom_call.1} parent=1 // pred_check
      _
    $region7: #{tpu_custom_call.1} parent=1 // pred_check_branch
      %25 = sbr.rel (0) target = $region9
    $region8: #{tpu_custom_call.1} parent=1 // pred_region
      _
    $region9: #{tpu_custom_call.1} parent=1 // pred_fallthru
      _
    // Predicated region
    $region10: #{tpu_custom_call.1} parent=1 // pred_check
      _
    $region11: #{tpu_custom_call.1} parent=1 // pred_check_branch
      %27 = sbr.rel (0) target = $region13
    $region12: #{tpu_custom_call.1} parent=1 // pred_region
      _
    $region13: #{tpu_custom_call.1} parent=1 // pred_fallthru
      _
    // Predicated region
    $region14: #{tpu_custom_call.1} parent=1 // pred_check
      _
    $region15: #{tpu_custom_call.1} parent=1 // pred_check_branch
      %29 = sbr.rel (0) target = $region17
    $region16: #{tpu_custom_call.1} parent=1 // pred_region
      _
    $region17: #{tpu_custom_call.1} parent=1 // pred_fallthru
      _
    // Predicated region
    $region18: #{tpu_custom_call.1} parent=1 // pred_check
      _
    $region19: #{tpu_custom_call.1} parent=1 // pred_check_branch
      %31 = sbr.rel (0) target = $region21
    $region20: #{tpu_custom_call.1} parent=1 // pred_region
      _
    $region21: #{tpu_custom_call.1} parent=1 // pred_fallthru
      _
    // Predicated region
    $region22: #{tpu_custom_call.1} parent=1 // pred_check
      _
    $region23: #{tpu_custom_call.1} parent=1 // pred_check_branch
      %33 = sbr.rel (0) target = $region25
    $region24: #{tpu_custom_call.1} parent=1 // pred_region
      _
    $region25: #{tpu_custom_call.1} parent=1 // pred_fallthru
      _
    // Predicated region
    $region26: #{tpu_custom_call.1} parent=1 // pred_check
      _
    $region27: #{tpu_custom_call.1} parent=1 // pred_check_branch
      %35 = sbr.rel (0) target = $region29
    $region28: #{tpu_custom_call.1} parent=1 // pred_region
      _
    $region29: #{tpu_custom_call.1} parent=1 // pred_fallthru
      _
    // Predicated region
    $region30: #{tpu_custom_call.1} parent=1 // pred_check
      _
    $region31: #{tpu_custom_call.1} parent=1 // pred_check_branch
      %37 = sbr.rel (0) target = $region33
    $region32: #{tpu_custom_call.1} parent=1 // pred_region
      _
    $region33: #{tpu_custom_call.1} parent=1 // pred_fallthru
      _
    // Predicated region
    $region34: #{tpu_custom_call.1} parent=1 // pred_check
      _
    $region35: #{tpu_custom_call.1} parent=1 // pred_check_branch
      %39 = sbr.rel (0) target = $region37
    $region36: #{tpu_custom_call.1} parent=1 // pred_region
      %41 = dma.done [#allocation4], 16
    $region37: #{tpu_custom_call.1} parent=1 // pred_fallthru
      _
    %42 = sfence
    %v43 = vlaneseq
    %v44 = vand.u32 %v43, 127
    %v45 = vlaneseq
    %v46 = vshrl.u32 %v45, 7
    %vm47 = vcmp.eq.s32.totalorder %v46, 0
    %s48 = sld [smem:[#allocation2]]
    %v49 = vstv %s48
    %v50 = vsel %vm47, %v49, 0
    %vm51 = vcmp.eq.s32.totalorder %v46, 1
    %s52 = sld [smem:[#allocation2 + $0x1]]
    %v53 = vstv %s52
    %v54 = vsel %vm51, %v53, %v50
    %vm55 = vcmp.eq.s32.totalorder %v46, 2
    %s56 = sld [smem:[#allocation2 + $0x2]]
    %v57 = vstv %s56
    %v58 = vsel %vm55, %v57, %v54
    %vm59 = vcmp.eq.s32.totalorder %v46, 3
    %s60 = sld [smem:[#allocation2 + $0x3]]
    %v61 = vstv %s60
    %v62 = vsel %vm59, %v61, %v58
    %vm63 = vcmp.eq.s32.totalorder %v44, %v62
    %v64 = vsel %vm63, 1, 0
    %v65 = vcvt.s32.f32 %v64
    %v66 = vld [vmem:[%s2] sm:$0xff]
    %v67 = vld [vmem:[%s3] sm:$0x3]
    %v69 = vperm.slane %v67, 0
    %v70 = vperm.slane %v67, 1
    %74 = vst [vmem:[#allocation1] ss:$2 sm:$0xff] %v66
    %v75 = vld.sshfl [vmem:[#allocation1] sm:$0xff pattern:$0x75316420]
    %v76 = vld.sshfl [vmem:[#allocation1 + $0x8] sm:$0xff pattern:$0x75316420]
    %vm77 = vcmask 31744
    %v79 = vsel %vm77, %v65, 0
    %vm81 = vcmask 1043456
    %v82 = vsel %vm81, %v75, 0
    %v84 = vsel %vm81, %v76, 0
    %86 = vmatpush.msra.mxu0 0.0
    %87 = vmatpush.msra.mxu0 0.0
    %88 = vmatpush.msra.mxu0 0.0
    %89 = vmatpush.msra.mxu0 0.0
    %90 = vmatpush.msra.mxu0 0.0
    %91 = vmatpush.msra.mxu0 0.0
    %92 = vmatpush.msra.mxu0 0.0
    %93 = vmatpush.msra.mxu0 0.0
    %94 = vmatpush.msra.mxu0 0.0
    %95 = vmatpush.msra.mxu0 0.0
    %96 = vmatpush.msra.mxu0 0.0
    %97 = vmatpush.msra.mxu0 0.0
    %98 = vmatpush.msra.mxu0 0.0
    %99 = vmatpush.msra.mxu0 0.0
    %100 = vmatpush.msra.mxu0 0.0
    %101 = vmatpush.msra.mxu0 %v82
    %102 = vmatmul.f32.gmra.mxu0 %v79
    %v103 = vpop.f32.mrf.mxu0
    %v104 = vadd.f32 %v69, %v103
    %105 = vdwg.mxu0
    %106 = vmatpush.msra.mxu0 0.0
    %107 = vmatpush.msra.mxu0 0.0
    %108 = vmatpush.msra.mxu0 0.0
    %109 = vmatpush.msra.mxu0 0.0
    %110 = vmatpush.msra.mxu0 0.0
    %111 = vmatpush.msra.mxu0 0.0
    %112 = vmatpush.msra.mxu0 0.0
    %113 = vmatpush.msra.mxu0 0.0
    %114 = vmatpush.msra.mxu0 0.0
    %115 = vmatpush.msra.mxu0 0.0
    %116 = vmatpush.msra.mxu0 0.0
    %117 = vmatpush.msra.mxu0 0.0
    %118 = vmatpush.msra.mxu0 0.0
    %119 = vmatpush.msra.mxu0 0.0
    %120 = vmatpush.msra.mxu0 0.0
    %121 = vmatpush.msra.mxu0 %v84
    %122 = vmatmul.f32.gmra.mxu0 %v79
    %v123 = vpop.f32.mrf.mxu0
    %v124 = vadd.f32 %v70, %v123
    %125 = vdwg.mxu0
    %v126 = vmax.f32 %v104, 0.0
    %v127 = vmax.f32 %v124, 0.0
    %v128 = vpack.c.bf16 %v126, %v126
    %v129 = vpack.c.bf16 %v127, %v127
    %v130 = vld [vmem:[%s4] sm:$0xff]
    %v131 = vld [vmem:[%s4 + $0x8] sm:$0xff]
    %v132 = vld [vmem:[%s4 + $0x10] sm:$0xff]
    %v133 = vld [vmem:[%s4 + $0x18] sm:$0xff]
    %v134 = vld [vmem:[%s4 + $0x20] sm:$0xff]
    %v135 = vld [vmem:[%s4 + $0x28] sm:$0xff]
    %v136 = vld [vmem:[%s4 + $0x30] sm:$0xff]
    %v137 = vld [vmem:[%s4 + $0x38] sm:$0xff]
    %v138 = vld [vmem:[%s4 + $0x40] sm:$0xff]
    %v139 = vld [vmem:[%s4 + $0x48] sm:$0xff]
    %v140 = vld [vmem:[%s4 + $0x50] sm:$0xff]
    %v141 = vld [vmem:[%s4 + $0x58] sm:$0xff]
    %v142 = vld [vmem:[%s4 + $0x60] sm:$0xff]
    %v143 = vld [vmem:[%s4 + $0x68] sm:$0xff]
    %v144 = vld [vmem:[%s4 + $0x70] sm:$0xff]
    %v145 = vld [vmem:[%s4 + $0x78] sm:$0xff]
    %v146 = vld [vmem:[%s4 + $0x80] sm:$0xff]
    %v147 = vld [vmem:[%s4 + $0x88] sm:$0xff]
    %v148 = vld [vmem:[%s4 + $0x90] sm:$0xff]
    %v149 = vld [vmem:[%s4 + $0x98] sm:$0xff]
    %v150 = vld [vmem:[%s4 + $0xa0] sm:$0xff]
    %v151 = vld [vmem:[%s4 + $0xa8] sm:$0xff]
    %v152 = vld [vmem:[%s4 + $0xb0] sm:$0xff]
    %v153 = vld [vmem:[%s4 + $0xb8] sm:$0xff]
    %v154 = vld [vmem:[%s4 + $0xc0] sm:$0xff]
    %v155 = vld [vmem:[%s4 + $0xc8] sm:$0xff]
    %v156 = vld [vmem:[%s4 + $0xd0] sm:$0xff]
    %v157 = vld [vmem:[%s4 + $0xd8] sm:$0xff]
    %v158 = vld [vmem:[%s4 + $0xe0] sm:$0xff]
    %v159 = vld [vmem:[%s4 + $0xe8] sm:$0xff]
    %v160 = vld [vmem:[%s4 + $0xf0] sm:$0xff]
    %v161 = vld [vmem:[%s4 + $0xf8] sm:$0xff]
    %v162 = vld [vmem:[%s5] sm:$0x3]
    %v164 = vperm.slane %v162, 0
    %v165 = vperm.slane %v162, 1
    %v200 = vunpack.c.l.b16 %v130
    %v201 = vunpack.c.h.b16 %v130
    %v202 = vunpack.c.l.b16 %v131
    %v203 = vunpack.c.h.b16 %v131
    %v204 = vunpack.c.l.b16 %v132
    %v205 = vunpack.c.h.b16 %v132
    %v206 = vunpack.c.l.b16 %v133
    %v207 = vunpack.c.h.b16 %v133
    %v208 = vunpack.c.l.b16 %v134
    %v209 = vunpack.c.h.b16 %v134
    %v210 = vunpack.c.l.b16 %v135
    %v211 = vunpack.c.h.b16 %v135
    %v212 = vunpack.c.l.b16 %v136
    %v213 = vunpack.c.h.b16 %v136
    %v214 = vunpack.c.l.b16 %v137
    %v215 = vunpack.c.h.b16 %v137
    %v216 = vunpack.c.l.b16 %v138
    %v217 = vunpack.c.h.b16 %v138
    %v218 = vunpack.c.l.b16 %v139
    %v219 = vunpack.c.h.b16 %v139
    %v220 = vunpack.c.l.b16 %v140
    %v221 = vunpack.c.h.b16 %v140
    %v222 = vunpack.c.l.b16 %v141
    %v223 = vunpack.c.h.b16 %v141
    %v224 = vunpack.c.l.b16 %v142
    %v225 = vunpack.c.h.b16 %v142
    %v226 = vunpack.c.l.b16 %v143
    %v227 = vunpack.c.h.b16 %v143
    %v228 = vunpack.c.l.b16 %v144
    %v229 = vunpack.c.h.b16 %v144
    %v230 = vunpack.c.l.b16 %v145
    %v231 = vunpack.c.h.b16 %v145
    %v232 = vunpack.c.l.b16 %v146
    %v233 = vunpack.c.h.b16 %v146
    %v234 = vunpack.c.l.b16 %v147
    %v235 = vunpack.c.h.b16 %v147
    %v236 = vunpack.c.l.b16 %v148
    %v237 = vunpack.c.h.b16 %v148
    %v238 = vunpack.c.l.b16 %v149
    %v239 = vunpack.c.h.b16 %v149
    %v240 = vunpack.c.l.b16 %v150
    %v241 = vunpack.c.h.b16 %v150
    %v242 = vunpack.c.l.b16 %v151
    %v243 = vunpack.c.h.b16 %v151
    %v244 = vunpack.c.l.b16 %v152
    %v245 = vunpack.c.h.b16 %v152
    %v246 = vunpack.c.l.b16 %v153
    %v247 = vunpack.c.h.b16 %v153
    %v248 = vunpack.c.l.b16 %v154
    %v249 = vunpack.c.h.b16 %v154
    %v250 = vunpack.c.l.b16 %v155
    %v251 = vunpack.c.h.b16 %v155
    %v252 = vunpack.c.l.b16 %v156
    %v253 = vunpack.c.h.b16 %v156
    %v254 = vunpack.c.l.b16 %v157
    %v255 = vunpack.c.h.b16 %v157
    %v256 = vunpack.c.l.b16 %v158
    %v257 = vunpack.c.h.b16 %v158
    %v258 = vunpack.c.l.b16 %v159
    %v259 = vunpack.c.h.b16 %v159
    %v260 = vunpack.c.l.b16 %v160
    %v261 = vunpack.c.h.b16 %v160
    %v262 = vunpack.c.l.b16 %v161
    %v263 = vunpack.c.h.b16 %v161
    %v264 = vpack.c.b16 %v202, %v200
    %v265 = vpack.c.b16 %v203, %v201
    %v266 = vpack.c.b16 %v206, %v204
    %v267 = vpack.c.b16 %v207, %v205
    %v268 = vpack.c.b16 %v210, %v208
    %v269 = vpack.c.b16 %v211, %v209
    %v270 = vpack.c.b16 %v214, %v212
    %v271 = vpack.c.b16 %v215, %v213
    %v272 = vpack.c.b16 %v218, %v216
    %v273 = vpack.c.b16 %v219, %v217
    %v274 = vpack.c.b16 %v222, %v220
    %v275 = vpack.c.b16 %v223, %v221
    %v276 = vpack.c.b16 %v226, %v224
    %v277 = vpack.c.b16 %v227, %v225
    %v278 = vpack.c.b16 %v230, %v228
    %v279 = vpack.c.b16 %v231, %v229
    %v280 = vpack.c.b16 %v234, %v232
    %v281 = vpack.c.b16 %v235, %v233
    %v282 = vpack.c.b16 %v238, %v236
    %v283 = vpack.c.b16 %v239, %v237
    %v284 = vpack.c.b16 %v242, %v240
    %v285 = vpack.c.b16 %v243, %v241
    %v286 = vpack.c.b16 %v246, %v244
    %v287 = vpack.c.b16 %v247, %v245
    %v288 = vpack.c.b16 %v250, %v248
    %v289 = vpack.c.b16 %v251, %v249
    %v290 = vpack.c.b16 %v254, %v252
    %v291 = vpack.c.b16 %v255, %v253
    %v292 = vpack.c.b16 %v258, %v256
    %v293 = vpack.c.b16 %v259, %v257
    %v294 = vpack.c.b16 %v262, %v260
    %v295 = vpack.c.b16 %v263, %v261
    %328 = vmatpush.bf16.msra.mxu0 %v278
    %329 = vmatpush.bf16.msra.mxu0 %v276
    %330 = vmatpush.bf16.msra.mxu0 %v274
    %331 = vmatpush.bf16.msra.mxu0 %v272
    %332 = vmatpush.bf16.msra.mxu0 %v270
    %333 = vmatpush.bf16.msra.mxu0 %v268
    %334 = vmatpush.bf16.msra.mxu0 %v266
    %335 = vmatpush.bf16.msra.mxu0 %v264
    %336 = vmatmul.bf16.gmra.mxu0 %v128
    %v337 = vpop.f32.mrf.mxu0
    %v338 = vadd.f32 %v164, %v337
    %v339 = vpop.f32.mrf.mxu0
    %340 = vdwg.mxu0
    %341 = vmatpush.bf16.msra.mxu0 %v294
    %342 = vmatpush.bf16.msra.mxu0 %v292
    %343 = vmatpush.bf16.msra.mxu0 %v290
    %344 = vmatpush.bf16.msra.mxu0 %v288
    %345 = vmatpush.bf16.msra.mxu0 %v286
    %346 = vmatpush.bf16.msra.mxu0 %v284
    %347 = vmatpush.bf16.msra.mxu0 %v282
    %348 = vmatpush.bf16.msra.mxu0 %v280
    %349 = vmatmul.bf16.gmra.mxu0 %v129
    %v350 = vpop.f32.mrf.mxu0
    %v351 = vadd.f32 %v338, %v350
    %v352 = vpop.f32.mrf.mxu0
    %353 = vdwg.mxu0
    %354 = vmatpush.bf16.msra.mxu0 %v279
    %355 = vmatpush.bf16.msra.mxu0 %v277
    %356 = vmatpush.bf16.msra.mxu0 %v275
    %357 = vmatpush.bf16.msra.mxu0 %v273
    %358 = vmatpush.bf16.msra.mxu0 %v271
    %359 = vmatpush.bf16.msra.mxu0 %v269
    %360 = vmatpush.bf16.msra.mxu0 %v267
    %361 = vmatpush.bf16.msra.mxu0 %v265
    %362 = vmatmul.bf16.gmra.mxu0 %v128
    %v363 = vpop.f32.mrf.mxu0
    %v364 = vadd.f32 %v165, %v363
    %v365 = vpop.f32.mrf.mxu0
    %366 = vdwg.mxu0
    %367 = vmatpush.bf16.msra.mxu0 %v295
    %368 = vmatpush.bf16.msra.mxu0 %v293
    %369 = vmatpush.bf16.msra.mxu0 %v291
    %370 = vmatpush.bf16.msra.mxu0 %v289
    %371 = vmatpush.bf16.msra.mxu0 %v287
    %372 = vmatpush.bf16.msra.mxu0 %v285
    %373 = vmatpush.bf16.msra.mxu0 %v283
    %374 = vmatpush.bf16.msra.mxu0 %v281
    %375 = vmatmul.bf16.gmra.mxu0 %v129
    %v376 = vpop.f32.mrf.mxu0
    %v377 = vadd.f32 %v364, %v376
    %v378 = vpop.f32.mrf.mxu0
    %379 = vdwg.mxu0
    %v380 = vmax.f32 %v351, 0.0
    %v381 = vmax.f32 %v377, 0.0
    %v382 = vld [vmem:[%s6] sm:$0xff]
    %v383 = vld [vmem:[%s6 + $0x8] sm:$0xff]
    %v384 = vld [vmem:[%s6 + $0x10] sm:$0xff]
    %v385 = vld [vmem:[%s6 + $0x18] sm:$0xff]
    %v386 = vld [vmem:[%s6 + $0x20] sm:$0xff]
    %v387 = vld [vmem:[%s6 + $0x28] sm:$0xff]
    %v388 = vld [vmem:[%s6 + $0x30] sm:$0xff]
    %v389 = vld [vmem:[%s6 + $0x38] sm:$0xff]
    %v390 = vld [vmem:[%s6 + $0x40] sm:$0xff]
    %v391 = vld [vmem:[%s6 + $0x48] sm:$0xff]
    %v392 = vld [vmem:[%s6 + $0x50] sm:$0xff]
    %v393 = vld [vmem:[%s6 + $0x58] sm:$0xff]
    %v394 = vld [vmem:[%s6 + $0x60] sm:$0xff]
    %v395 = vld [vmem:[%s6 + $0x68] sm:$0xff]
    %v396 = vld [vmem:[%s6 + $0x70] sm:$0xff]
    %v397 = vld [vmem:[%s6 + $0x78] sm:$0xff]
    %v398 = vld [vmem:[%s6 + $0x80] sm:$0xff]
    %v399 = vld [vmem:[%s6 + $0x88] sm:$0xff]
    %v400 = vld [vmem:[%s6 + $0x90] sm:$0xff]
    %v401 = vld [vmem:[%s6 + $0x98] sm:$0xff]
    %v402 = vld [vmem:[%s6 + $0xa0] sm:$0xff]
    %v403 = vld [vmem:[%s6 + $0xa8] sm:$0xff]
    %v404 = vld [vmem:[%s6 + $0xb0] sm:$0xff]
    %v405 = vld [vmem:[%s6 + $0xb8] sm:$0xff]
    %v406 = vld [vmem:[%s6 + $0xc0] sm:$0xff]
    %v407 = vld [vmem:[%s6 + $0xc8] sm:$0xff]
    %v408 = vld [vmem:[%s6 + $0xd0] sm:$0xff]
    %v409 = vld [vmem:[%s6 + $0xd8] sm:$0xff]
    %v410 = vld [vmem:[%s6 + $0xe0] sm:$0xff]
    %v411 = vld [vmem:[%s6 + $0xe8] sm:$0xff]
    %v412 = vld [vmem:[%s6 + $0xf0] sm:$0xff]
    %v413 = vld [vmem:[%s6 + $0xf8] sm:$0xff]
    %v414 = vld [vmem:[%s7] sm:$0x1]
    %v416 = vperm.slane %v414, 0
    %418 = vmatpush.msra.mxu0 %v397
    %419 = vmatpush.msra.mxu0 %v396
    %420 = vmatpush.msra.mxu0 %v395
    %421 = vmatpush.msra.mxu0 %v394
    %422 = vmatpush.msra.mxu0 %v393
    %423 = vmatpush.msra.mxu0 %v392
    %424 = vmatpush.msra.mxu0 %v391
    %425 = vmatpush.msra.mxu0 %v390
    %426 = vmatpush.msra.mxu0 %v389
    %427 = vmatpush.msra.mxu0 %v388
    %428 = vmatpush.msra.mxu0 %v387
    %429 = vmatpush.msra.mxu0 %v386
    %430 = vmatpush.msra.mxu0 %v385
    %431 = vmatpush.msra.mxu0 %v384
    %432 = vmatpush.msra.mxu0 %v383
    %433 = vmatpush.msra.mxu0 %v382
    %434 = vmatmul.f32.gmra.mxu0 %v380
    %v435 = vpop.f32.mrf.mxu0
    %v436 = vadd.f32 %v416, %v435
    %437 = vdwg.mxu0
    %438 = vmatpush.msra.mxu0 %v413
    %439 = vmatpush.msra.mxu0 %v412
    %440 = vmatpush.msra.mxu0 %v411
    %441 = vmatpush.msra.mxu0 %v410
    %442 = vmatpush.msra.mxu0 %v409
    %443 = vmatpush.msra.mxu0 %v408
    %444 = vmatpush.msra.mxu0 %v407
    %445 = vmatpush.msra.mxu0 %v406
    %446 = vmatpush.msra.mxu0 %v405
    %447 = vmatpush.msra.mxu0 %v404
    %448 = vmatpush.msra.mxu0 %v403
    %449 = vmatpush.msra.mxu0 %v402
    %450 = vmatpush.msra.mxu0 %v401
    %451 = vmatpush.msra.mxu0 %v400
    %452 = vmatpush.msra.mxu0 %v399
    %453 = vmatpush.msra.mxu0 %v398
    %454 = vmatmul.f32.gmra.mxu0 %v381
    %v455 = vpop.f32.mrf.mxu0
    %v456 = vadd.f32 %v436, %v455
    %457 = vdwg.mxu0
    %v458 = vmax.f32 %v456, 0.0
    %vm459 = vcmp.ne.f32.partialorder %v456, %v456
    %v460 = vadd.f32 %v456, 0.0
    %v461 = vand.u32 2147483647, %v456
    %v462 = vsub.f32 0.0, %v461
    %v463 = vmul.f32 %v462, 1.442695
    %v464 = vpow.pop %v463
    %v465 = vadd.f32 %v464, 1.0
    %v466 = vlog2.pop %v465
    %v467 = vmul.f32 %v466, 0.6931472
    %v468 = vmul.f32 -0.5, %v464
    %v469 = vadd.f32 %v468, 1.0
    %v470 = vmul.f32 %v469, %v464
    %v471 = vand.u32 2147483647, %v464
    %vm472 = vcmp.lt.f32.partialorder %v471, 0.0004427343
    %v473 = vsel %vm472, %v470, %v467
    %v474 = vadd.f32 %v458, %v473
    %v475 = vsel %vm459, %v460, %v474
    %v476 = vld [vmem:[%s1] sm:$0xf]
    %478 = vrot.lane.b32.xlu0 %v476, 8
    %v479 = vpop.permute.xlu0 %478
    %v481 = vmul.f32 %v475, %v479
    %483 = vrot.lane.b32.xlu0 %v481, 120
    %v484 = vpop.permute.xlu0 %483
    %v486 = vadd.f32 %v456, %v484
    %v487 = vmul.f32 %v476, %v476
    %v488 = vmul.f32 %v487, -0.5
    %v489 = vlog2.pop %v475
    %v490 = vmul.f32 %v489, 0.6931472
    %492 = vrot.lane.b32.xlu0 %v490, 120
    %v493 = vpop.permute.xlu0 %492
    %v495 = vsub.f32 %v488, %v493
    %v496 = vsub.f32 %v495, 0.9189385
    %v497 = vtanh.pop %v486
    %v498 = vmul.f32 %v497, 1.5708
    %vm499 = vcmask 60416
    %500 = vst.msk [vmem:[#allocation5] sm:$0xf] %vm499, %v498
    %v501 = vmul.f32 %v497, %v497
    %v502 = vsub.f32 1.0, %v501
    %v503 = vadd.f32 %v502, 1e-07
    %v504 = vlog2.pop %v503
    %v505 = vmul.f32 %v504, 0.6931472
    %v506 = vsub.f32 %v496, %v505
    %508 = vrot.lane.b32.xlu0 %v506, 8
    %v509 = vpop.permute.xlu0 %508
    %vm511 = vcmask 126016
    %512 = vst.msk [vmem:[#allocation5] sm:$0xf] %vm511, %v509
    // Predicated region
    $region38: #{tpu_custom_call.1} parent=1 // pred_check
      _
    $region39: #{tpu_custom_call.1} parent=1 // pred_check_branch
      %514 = sbr.rel (0) target = $region41
    $region40: #{tpu_custom_call.1} parent=1 // pred_region
      %516 = vsyncadd [#allocation3], 0
      %s518 = sshll.u32 [#allocation5], 4
      %s519 = int_to_ptr.vmem [resolvable:$true] %s518
      %s520 = sshll.u32 %s8, 4
      %s521 = int_to_ptr.hbm [resolvable:$true] %s520
      %523 = dma.vmem_to_hbm [thread:$0]  %s519, 64, %s521, [#allocation3]
    $region41: #{tpu_custom_call.1} parent=1 // pred_fallthru
      _
    // Predicated region
    $region42: #{tpu_custom_call.1} parent=1 // pred_check
      _
    $region43: #{tpu_custom_call.1} parent=1 // pred_check_branch
      %525 = sbr.rel (0) target = $region45
    $region44: #{tpu_custom_call.1} parent=1 // pred_region
      %527 = dma.done [#allocation3], 64
    $region45: #{tpu_custom_call.1} parent=1 // pred_fallthru
      _
    %528 = vsyncpa [#allocation3], 1
    %529 = vsyncpa [#allocation4], 1

</llo_original>
